<compile_context>
chip_gen: v7x
topology: tpu7x:2x2x1
jax: 0.10.0
libtpu: 0.0.40
codegen_flags: <defaults>
</compile_context>

<pallas_src>
import jax
import jax.numpy as jnp
from jax.experimental import pallas as pl
from jax.experimental.pallas import tpu as pltpu

LEAKY_SLOPE = 0.01      # nn.LeakyReLU() default negative_slope
_LANE_PAD = 128         # pad packed hidden width to a lane-dense multiple of 128
_MIN_SPLIT_ROWS = 2048  # only split mid-size N across 2 TCs if each half >= 1024 rows


# ---------------------------------------------------------------------------
# Generation-aware tiling configuration.
# ---------------------------------------------------------------------------
def _hw_config():
    """Pick row-tile cap / VMEM limit / megacore-split policy from the chip."""
    vmem_bytes = None
    try:
        info = pltpu.get_tpu_info()
        vmem_bytes = getattr(info, "vmem_capacity_bytes", None)
    except Exception:
        vmem_bytes = None
    if vmem_bytes is None:
        vmem_bytes = 64 * 1024 * 1024  # conservative (v7x-sized)

    if vmem_bytes >= 100 * 1024 * 1024:
        # v5e / v6e: 128 MiB physical VMEM, single TensorCore.
        return {"row_tile": 8192,
                "vmem_limit": 96 * 1024 * 1024,
                "prefer_even_grid": False}
    # v7x-class: 64 MiB physical VMEM, 2 TensorCores -> want grid >= 2.
    return {"row_tile": 4096,
            "vmem_limit": 32 * 1024 * 1024,
            "prefer_even_grid": True}


def _choose_tile(n_rows, cfg):
    cap = cfg["row_tile"]
    if n_rows > cap:
        return cap
    if cfg["prefer_even_grid"] and n_rows >= _MIN_SPLIT_ROWS:
        # Split mid-size batches into two blocks so the "parallel" grid axis
        # can be sharded across both v7x TensorCores.
        half = -(-n_rows // 2)
        half = ((half + 7) // 8) * 8     # keep sublane dim a multiple of 8
        return half
    return n_rows                        # single full-extent block


# ---------------------------------------------------------------------------
# Fused kernel: the entire 3-branch MLP in one body (static unroll over layers).
# ---------------------------------------------------------------------------
def _make_fused_kernel(num_layers, mxu_dtype):
    def kernel(*refs):
        x_ref = refs[0]
        o_ref = refs[-1]
        wb = refs[1:-1]                      # w0, b0, w1, b1, ..., w_{L-1}, b_{L-1}

        h = x_ref[...]
        # Hidden layers: h = x @ W_t + b ; x = h + leaky_relu(h) ; dropout(eval)=id
        for layer in range(num_layers - 1):
            w_ref, b_ref = wb[2 * layer], wb[2 * layer + 1]
            h = jnp.dot(h.astype(mxu_dtype), w_ref[...],
                        preferred_element_type=jnp.float32)
            h = h + b_ref[...]                                  # f32 epilogue (v5e-safe)
            # Fused residual + LeakyReLU:  h + leaky_relu(h)  ==  h * (h>0 ? 2 : 1+slope)
            h = h * jnp.where(h > 0, 2.0, 1.0 + LEAKY_SLOPE)

        # Head layer (block-structured [pad(3*hidden), 7]): plain linear.
        w_ref, b_ref = wb[-2], wb[-1]
        out = jnp.dot(h.astype(mxu_dtype), w_ref[...],
                      preferred_element_type=jnp.float32)
        out = out + b_ref[...]
        o_ref[...] = out.astype(o_ref.dtype)

    return kernel


def fused_link_predictor(x, packed_params, *, mxu_dtype=jnp.float32):
    """x: [N, in_dim]; packed_params: list of (W_t [K, M], b [M]). Returns [N, 7]."""
    N, in_dim = x.shape
    total_out = packed_params[-1][0].shape[1]
    num_layers = len(packed_params)

    cfg = _hw_config()
    tile_n = _choose_tile(N, cfg)
    grid = (pl.cdiv(N, tile_n),)

    in_specs = [pl.BlockSpec((tile_n, in_dim), lambda i: (i, 0))]
    # bf16 path: cast the x stream host-side too (halves the dominant HBM read);
    # no-op for the default f32 path.
    args = [x.astype(mxu_dtype)]
    for w, b in packed_params:
        K, M = w.shape
        # Weights / biases: grid-invariant full blocks, VMEM resident for the whole
        # forward (index_map constant -> no re-fetch).
        in_specs.append(pl.BlockSpec((K, M), lambda i: (0, 0)))
        in_specs.append(pl.BlockSpec((1, M), lambda i: (0, 0)))
        args.append(w.astype(mxu_dtype))                        # cast host-side once
        args.append(b.reshape(1, M).astype(jnp.float32))        # f32 epilogue

    return pl.pallas_call(
        _make_fused_kernel(num_layers, mxu_dtype),
        out_shape=jax.ShapeDtypeStruct((N, total_out), jnp.float32),
        grid=grid,
        in_specs=in_specs,
        out_specs=pl.BlockSpec((tile_n, total_out), lambda i: (i, 0)),
        compiler_params=pltpu.CompilerParams(
            dimension_semantics=("parallel",),       # rows independent (v7x megacore)
            vmem_limit_bytes=cfg["vmem_limit"],      # generation-aware scoped limit
        ),
    )(*args)


def link_predictor_forward(x, packed_params, out_dims=(3, 1, 3),
                           *, mxu_dtype=jnp.float32):
    out = fused_link_predictor(x, packed_params, mxu_dtype=mxu_dtype)
    o0 = out[:, :out_dims[0]]
    o1 = out[:, out_dims[0]:out_dims[0] + out_dims[1]]
    o2 = out[:, out_dims[0] + out_dims[1]:]
    return o0, o1, o2


# ---------------------------------------------------------------------------
# Parameter construction (torch.nn.Linear-style init) and branch packing.
# ---------------------------------------------------------------------------
def _init_linear(key, in_features, out_features):
    """Deterministic init matching torch.nn.Linear's U(-1/sqrt(fan_in), +...)."""
    kw, kb = jax.random.split(key)
    bound = 1.0 / jnp.sqrt(jnp.float32(in_features))
    # Stored already transposed: [in_features, out_features], so y = x @ W_t + b.
    w_t = jax.random.uniform(kw, (in_features, out_features), jnp.float32,
                             minval=-bound, maxval=bound)
    b = jax.random.uniform(kb, (out_features,), jnp.float32,
                           minval=-bound, maxval=bound)
    return w_t, b


def make_branch_params(key, in_dim, hidden_dim, final_out, num_layers):
    dims = [in_dim] + [hidden_dim] * (num_layers - 1) + [final_out]
    keys = jax.random.split(key, num_layers)
    return [_init_linear(keys[i], dims[i], dims[i + 1]) for i in range(num_layers)]


def pack_branch_params(params0, params1, params2, hidden_dim, out_dims=(3, 1, 3)):
    """Pack three per-branch parameter lists into one lane-dense, 128-padded chain.

    Zero-padding is exact: padded channels get zero weights/bias, stay zero through
    the bias + residual-LeakyReLU scale, and have zero head rows.
    """
    branches = (params0, params1, params2)
    num_layers = len(params0)
    width = 3 * hidden_dim
    padded = ((width + _LANE_PAD - 1) // _LANE_PAD) * _LANE_PAD
    pad = padded - width

    packed = []
    # Layer 0: shared input -> concat along the output-feature axis, pad to 128-mult.
    w = jnp.concatenate([p[0][0] for p in branches], axis=1)          # [in, 3*hidden]
    w = jnp.pad(w, ((0, 0), (0, pad)))                                # [in, padded]
    b = jnp.pad(jnp.concatenate([p[0][1] for p in branches], axis=0), (0, pad))
    packed.append((w, b))
    # Middle layers: block-diagonal so branches stay independent, pad both dims.
    for i in range(1, num_layers - 1):
        w = jax.scipy.linalg.block_diag(*[p[i][0] for p in branches])  # [3h, 3h]
        w = jnp.pad(w, ((0, pad), (0, pad)))                           # [padded, padded]
        b = jnp.pad(jnp.concatenate([p[i][1] for p in branches], axis=0), (0, pad))
        packed.append((w, b))
    # Head: block-structured [padded, 3+1+3] (zero rows for padded channels).
    total_out = sum(out_dims)
    w = jnp.zeros((padded, total_out), jnp.float32)
    col = 0
    for bi, p in enumerate(branches):
        wh, _ = p[-1]
        w = w.at[bi * hidden_dim:(bi + 1) * hidden_dim,
                 col:col + out_dims[bi]].set(wh)
        col += out_dims[bi]
    b = jnp.concatenate([p[-1][1] for p in branches], axis=0)
    packed.append((w, b))
    return packed


# ---------------------------------------------------------------------------
# Pure-JAX reference (unpacked, per-branch) for correctness checking.
# ---------------------------------------------------------------------------
def reference_forward(x, params0, params1, params2):
    def branch(h, params):
        for w_t, b in params[:-1]:
            h = jnp.dot(h, w_t, precision=jax.lax.Precision.HIGHEST) + b
            h = h + jnp.where(h > 0, h, LEAKY_SLOPE * h)
        w_t, b = params[-1]
        return jnp.dot(h, w_t, precision=jax.lax.Precision.HIGHEST) + b
    return branch(x, params0), branch(x, params1), branch(x, params2)


if __name__ == "__main__":
    in_dim, hidden_dim, num_layers, batch = 32, 32, 3, 8

    root = jax.random.PRNGKey(0)
    k_x, k0, k1, k2, k_big = jax.random.split(root, 5)

    params0 = make_branch_params(k0, in_dim, hidden_dim, 3, num_layers)
    params1 = make_branch_params(k1, in_dim, hidden_dim, 1, num_layers)
    params2 = make_branch_params(k2, in_dim, hidden_dim, 3, num_layers)
    packed = pack_branch_params(params0, params1, params2, hidden_dim, (3, 1, 3))

    fwd = jax.jit(link_predictor_forward)

    # --- Small batch: matches the module's toy usage, grid = 1 -------------
    x = jax.random.normal(k_x, (batch, in_dim), jnp.float32)
    out, out1, out2 = fwd(x, packed)
    jax.block_until_ready((out, out1, out2))

    assert out.shape == (batch, 3)
    assert out1.shape == (batch, 1)
    assert out2.shape == (batch, 3)

    r0, r1, r2 = reference_forward(x, params0, params1, params2)
    for got, ref in ((out, r0), (out1, r1), (out2, r2)):
        err = float(jnp.max(jnp.abs(got - ref)))
        assert jnp.allclose(got, ref, atol=5e-3, rtol=5e-3), f"max abs err {err}"

    # --- Large batch: exercises the multi-block parallel row grid, including
    # a non-multiple last (OOB-padded) block whose stores are clipped. -------
    n_big = 20000
    x_big = jax.random.normal(k_big, (n_big, in_dim), jnp.float32)
    b0, b1, b2 = fwd(x_big, packed)
    jax.block_until_ready((b0, b1, b2))
    rb0, rb1, rb2 = reference_forward(x_big, params0, params1, params2)
    for got, ref in ((b0, rb0), (b1, rb1), (b2, rb2)):
        err = float(jnp.max(jnp.abs(got - ref)))
        assert jnp.allclose(got, ref, atol=5e-3, rtol=5e-3), f"max abs err {err}"

    print("KERNEL_OK")
</pallas_src>

<mosaic_0001>
module attributes {stable_mosaic.version = 11 : i64} {
  func.func @kernel(%arg0: i32, %arg1: memref<8x32xf32, #tpu.memory_space<vmem>>, %arg2: memref<32x128xf32, #tpu.memory_space<vmem>>, %arg3: memref<1x128xf32, #tpu.memory_space<vmem>>, %arg4: memref<128x128xf32, #tpu.memory_space<vmem>>, %arg5: memref<1x128xf32, #tpu.memory_space<vmem>>, %arg6: memref<128x7xf32, #tpu.memory_space<vmem>>, %arg7: memref<1x7xf32, #tpu.memory_space<vmem>>, %arg8: memref<8x7xf32, #tpu.memory_space<vmem>>) attributes {dimension_semantics = [#tpu.dimension_semantics<parallel>], iteration_bounds = array<i64: 1>, scalar_prefetch = 0 : i64, scratch_operands = 0 : i64, tpu.core_type = #tpu.core_type<tc>, window_params = [{transform_indices = @transform_0, window_bounds = array<i64: 8, 32>}, {pipeline_mode = #tpu.pipeline_mode<synchronous>, transform_indices = @transform_1, window_bounds = array<i64: 32, 128>}, {pipeline_mode = #tpu.pipeline_mode<synchronous>, transform_indices = @transform_2, window_bounds = array<i64: 1, 128>}, {pipeline_mode = #tpu.pipeline_mode<synchronous>, transform_indices = @transform_3, window_bounds = array<i64: 128, 128>}, {pipeline_mode = #tpu.pipeline_mode<synchronous>, transform_indices = @transform_4, window_bounds = array<i64: 1, 128>}, {pipeline_mode = #tpu.pipeline_mode<synchronous>, transform_indices = @transform_5, window_bounds = array<i64: 128, 7>}, {pipeline_mode = #tpu.pipeline_mode<synchronous>, transform_indices = @transform_6, window_bounds = array<i64: 1, 7>}, {transform_indices = @transform_7, window_bounds = array<i64: 8, 7>}]} {
    %c0 = arith.constant 0 : index
    %c0_0 = arith.constant 0 : index
    %0 = vector.load %arg1[%c0, %c0_0] : memref<8x32xf32, #tpu.memory_space<vmem>>, vector<8x32xf32>
    %c0_1 = arith.constant 0 : index
    %c0_2 = arith.constant 0 : index
    %1 = vector.load %arg2[%c0_1, %c0_2] : memref<32x128xf32, #tpu.memory_space<vmem>>, vector<32x128xf32>
    %cst = arith.constant dense<0.000000e+00> : vector<8x128xf32>
    %2 = tpu.matmul %0, %1, %cst {dimension_numbers = #tpu.dot_dimension_numbers<[1], [0], [0], [1], [0, 0, 1, 1], [], []>} : vector<8x32xf32>, vector<32x128xf32>, vector<8x128xf32> -> vector<8x128xf32>
    %c0_3 = arith.constant 0 : index
    %c0_4 = arith.constant 0 : index
    %3 = vector.load %arg3[%c0_3, %c0_4] : memref<1x128xf32, #tpu.memory_space<vmem>>, vector<1x128xf32>
    %4 = vector.broadcast %3 : vector<1x128xf32> to vector<8x128xf32>
    %5 = arith.addf %2, %4 : vector<8x128xf32>
    %cst_5 = arith.constant 0.000000e+00 : f32
    %6 = vector.broadcast %cst_5 : f32 to vector<8x128xf32>
    %7 = arith.cmpf ogt, %5, %6 : vector<8x128xf32>
    %cst_6 = arith.constant 2.000000e+00 : f32
    %cst_7 = arith.constant 1.010000e+00 : f32
    %8 = vector.broadcast %cst_6 : f32 to vector<8x128xf32>
    %9 = vector.broadcast %cst_7 : f32 to vector<8x128xf32>
    %10 = arith.select %7, %8, %9 : vector<8x128xi1>, vector<8x128xf32>
    %11 = arith.mulf %5, %10 : vector<8x128xf32>
    %c0_8 = arith.constant 0 : index
    %c0_9 = arith.constant 0 : index
    %12 = vector.load %arg4[%c0_8, %c0_9] : memref<128x128xf32, #tpu.memory_space<vmem>>, vector<128x128xf32>
    %cst_10 = arith.constant dense<0.000000e+00> : vector<8x128xf32>
    %13 = tpu.matmul %11, %12, %cst_10 {dimension_numbers = #tpu.dot_dimension_numbers<[1], [0], [0], [1], [0, 0, 1, 1], [], []>} : vector<8x128xf32>, vector<128x128xf32>, vector<8x128xf32> -> vector<8x128xf32>
    %c0_11 = arith.constant 0 : index
    %c0_12 = arith.constant 0 : index
    %14 = vector.load %arg5[%c0_11, %c0_12] : memref<1x128xf32, #tpu.memory_space<vmem>>, vector<1x128xf32>
    %15 = vector.broadcast %14 : vector<1x128xf32> to vector<8x128xf32>
    %16 = arith.addf %13, %15 : vector<8x128xf32>
    %cst_13 = arith.constant 0.000000e+00 : f32
    %17 = vector.broadcast %cst_13 : f32 to vector<8x128xf32>
    %18 = arith.cmpf ogt, %16, %17 : vector<8x128xf32>
    %cst_14 = arith.constant 2.000000e+00 : f32
    %cst_15 = arith.constant 1.010000e+00 : f32
    %19 = vector.broadcast %cst_14 : f32 to vector<8x128xf32>
    %20 = vector.broadcast %cst_15 : f32 to vector<8x128xf32>
    %21 = arith.select %18, %19, %20 : vector<8x128xi1>, vector<8x128xf32>
    %22 = arith.mulf %16, %21 : vector<8x128xf32>
    %c0_16 = arith.constant 0 : index
    %c0_17 = arith.constant 0 : index
    %23 = vector.load %arg6[%c0_16, %c0_17] : memref<128x7xf32, #tpu.memory_space<vmem>>, vector<128x7xf32>
    %cst_18 = arith.constant dense<0.000000e+00> : vector<8x7xf32>
    %24 = tpu.matmul %22, %23, %cst_18 {dimension_numbers = #tpu.dot_dimension_numbers<[1], [0], [0], [1], [0, 0, 1, 1], [], []>} : vector<8x128xf32>, vector<128x7xf32>, vector<8x7xf32> -> vector<8x7xf32>
    %c0_19 = arith.constant 0 : index
    %c0_20 = arith.constant 0 : index
    %25 = vector.load %arg7[%c0_19, %c0_20] : memref<1x7xf32, #tpu.memory_space<vmem>>, vector<1x7xf32>
    %26 = vector.broadcast %25 : vector<1x7xf32> to vector<8x7xf32>
    %27 = arith.addf %24, %26 : vector<8x7xf32>
    %c0_21 = arith.constant 0 : index
    %c0_22 = arith.constant 0 : index
    %28 = vector.load %arg8[%c0_21, %c0_22] : memref<8x7xf32, #tpu.memory_space<vmem>>, vector<8x7xf32>
    tpu.vector_store %arg8[%c0_21, %c0_22], %27 {strides = array<i32>} : memref<8x7xf32, #tpu.memory_space<vmem>>, vector<8x7xf32>,
    return
  }
  func.func @transform_0(%arg0: i32) -> (i32, i32) {
    %c0_i32 = arith.constant 0 : i32
    %c0_i32_0 = arith.constant 0 : i32
    return %arg0, %c0_i32 : i32, i32
  }
  func.func @transform_1(%arg0: i32) -> (i32, i32) {
    %c0_i32 = arith.constant 0 : i32
    %c0_i32_0 = arith.constant 0 : i32
    %c0_i32_1 = arith.constant 0 : i32
    return %c0_i32, %c0_i32_0 : i32, i32
  }
  func.func @transform_2(%arg0: i32) -> (i32, i32) {
    %c0_i32 = arith.constant 0 : i32
    %c0_i32_0 = arith.constant 0 : i32
    %c0_i32_1 = arith.constant 0 : i32
    return %c0_i32, %c0_i32_0 : i32, i32
  }
  func.func @transform_3(%arg0: i32) -> (i32, i32) {
    %c0_i32 = arith.constant 0 : i32
    %c0_i32_0 = arith.constant 0 : i32
    %c0_i32_1 = arith.constant 0 : i32
    return %c0_i32, %c0_i32_0 : i32, i32
  }
  func.func @transform_4(%arg0: i32) -> (i32, i32) {
    %c0_i32 = arith.constant 0 : i32
    %c0_i32_0 = arith.constant 0 : i32
    %c0_i32_1 = arith.constant 0 : i32
    return %c0_i32, %c0_i32_0 : i32, i32
  }
  func.func @transform_5(%arg0: i32) -> (i32, i32) {
    %c0_i32 = arith.constant 0 : i32
    %c0_i32_0 = arith.constant 0 : i32
    %c0_i32_1 = arith.constant 0 : i32
    return %c0_i32, %c0_i32_0 : i32, i32
  }
  func.func @transform_6(%arg0: i32) -> (i32, i32) {
    %c0_i32 = arith.constant 0 : i32
    %c0_i32_0 = arith.constant 0 : i32
    %c0_i32_1 = arith.constant 0 : i32
    return %c0_i32, %c0_i32_0 : i32, i32
  }
  func.func @transform_7(%arg0: i32) -> (i32, i32) {
    %c0_i32 = arith.constant 0 : i32
    %c0_i32_0 = arith.constant 0 : i32
    return %arg0, %c0_i32 : i32, i32
  }
}

</mosaic_0001>

<llo_original>
// kernel: link_predictor_forward.1
$region0: #{link_predictor_forward.1}
  #allocation0 [shape = 'u32[]', space=smem, size = 0x4, offset = 0x4, fixed_abs, tag = 'smem constant byte address 0x4 - core index']
  #allocation1 [shape = 'u32[144,128]{1,0:T(1,128)}', space=vmem, size = 0x12000, scoped, tag = 'internal scratch']
  %s0 = inlined_call_operand.vmem [shape: f32[8,32], index: 0, kind: input, shape index: {}]
  %s1 = inlined_call_operand.hbm [shape: f32[32,128], index: 1, kind: input, shape index: {}]
  %s2 = inlined_call_operand.vmem [shape: f32[1,128], index: 2, kind: input, shape index: {}]
  %s3 = inlined_call_operand.vmem [shape: f32[128,128], index: 3, kind: input, shape index: {}]
  %s4 = inlined_call_operand.vmem [shape: f32[1,128], index: 4, kind: input, shape index: {}]
  %s5 = inlined_call_operand.vmem [shape: f32[128,7], index: 5, kind: input, shape index: {}]
  %s6 = inlined_call_operand.vmem [shape: f32[1,7], index: 6, kind: input, shape index: {}]
  %s7 = inlined_call_operand.vmem [shape: f32[8,7], index: 7, kind: output, shape index: {}]
  %s8 = sld [smem:[#allocation0]]
  $region42: #{link_predictor_forward.1} parent=0
    _
  %s10 = ssub.s32 1, %s8
  %s11 = scalar_select 0, %s10, %s8
  $region1: #{link_predictor_forward.1} parent=0
    #allocation2 [shape = 'u8[16384]{0}', space=vmem, size = 0x4000, scoped, tag = 'input window, operand 1, single buffered']
    #allocation3 [shape = 's32[1]{0}', space=sflag, size = 0x4, scoped, tag = 'scoped memory for link_predictor_forward.1']
    %12 = vsyncpa [#allocation3], 0
    // Predicated region
    $region2: #{link_predictor_forward.1} parent=1 // pred_check
      _
    $region3: #{link_predictor_forward.1} parent=1 // pred_check_branch
      %14 = sbr.rel (0) target = $region5
    $region4: #{link_predictor_forward.1} parent=1 // pred_region
      _
    $region5: #{link_predictor_forward.1} parent=1 // pred_fallthru
      _
    // Predicated region
    $region6: #{link_predictor_forward.1} parent=1 // pred_check
      _
    $region7: #{link_predictor_forward.1} parent=1 // pred_check_branch
      %16 = sbr.rel (0) target = $region9
    $region8: #{link_predictor_forward.1} parent=1 // pred_region
      %s18 = ssub.s32 512, 512
      %19 = vsyncadd [#allocation3], %s18
      %s20 = sshll.u32 [#allocation2], 4
      %s21 = int_to_ptr.vmem [resolvable:$true] %s20
      %26 = dma.hbm_to_vmem [thread:$0]  %s1, 512, %s21, [#allocation3], 128, 128, 8
    $region9: #{link_predictor_forward.1} parent=1 // pred_fallthru
      _
    // Predicated region
    $region10: #{link_predictor_forward.1} parent=1 // pred_check
      _
    $region11: #{link_predictor_forward.1} parent=1 // pred_check_branch
      %28 = sbr.rel (0) target = $region13
    $region12: #{link_predictor_forward.1} parent=1 // pred_region
      _
    $region13: #{link_predictor_forward.1} parent=1 // pred_fallthru
      _
    // Predicated region
    $region14: #{link_predictor_forward.1} parent=1 // pred_check
      _
    $region15: #{link_predictor_forward.1} parent=1 // pred_check_branch
      %30 = sbr.rel (0) target = $region17
    $region16: #{link_predictor_forward.1} parent=1 // pred_region
      _
    $region17: #{link_predictor_forward.1} parent=1 // pred_fallthru
      _
    // Predicated region
    $region18: #{link_predictor_forward.1} parent=1 // pred_check
      _
    $region19: #{link_predictor_forward.1} parent=1 // pred_check_branch
      %32 = sbr.rel (0) target = $region21
    $region20: #{link_predictor_forward.1} parent=1 // pred_region
      _
    $region21: #{link_predictor_forward.1} parent=1 // pred_fallthru
      _
    // Predicated region
    $region22: #{link_predictor_forward.1} parent=1 // pred_check
      _
    $region23: #{link_predictor_forward.1} parent=1 // pred_check_branch
      %34 = sbr.rel (0) target = $region25
    $region24: #{link_predictor_forward.1} parent=1 // pred_region
      _
    $region25: #{link_predictor_forward.1} parent=1 // pred_fallthru
      _
    // Predicated region
    $region26: #{link_predictor_forward.1} parent=1 // pred_check
      _
    $region27: #{link_predictor_forward.1} parent=1 // pred_check_branch
      %36 = sbr.rel (0) target = $region29
    $region28: #{link_predictor_forward.1} parent=1 // pred_region
      _
    $region29: #{link_predictor_forward.1} parent=1 // pred_fallthru
      _
    // Predicated region
    $region30: #{link_predictor_forward.1} parent=1 // pred_check
      _
    $region31: #{link_predictor_forward.1} parent=1 // pred_check_branch
      %38 = sbr.rel (0) target = $region33
    $region32: #{link_predictor_forward.1} parent=1 // pred_region
      %39 = dma.done [#allocation3], 512
    $region33: #{link_predictor_forward.1} parent=1 // pred_fallthru
      _
    %v40 = vld [vmem:[%s0] sm:$0xff]
    %v41 = vld [vmem:[#allocation2] sm:$0xff]
    %v42 = vld [vmem:[#allocation2 + $0x8] sm:$0xff]
    %v43 = vld [vmem:[#allocation2 + $0x10] sm:$0xff]
    %v44 = vld [vmem:[#allocation2 + $0x18] sm:$0xff]
    %v45 = vld [vmem:[%s2] sm:$0x1]
    %v47 = vlaneseq
    %v48 = vshrl.u32 %v47, 7
    %v49 = vsub.s32 0, %v48
    %v50 = vrot.slane %v45, %v49
    %vm52 = vcmask 261120
    %v54 = vsel %vm52, %v40, 0
    %56 = vmatprep.subr.mxu0 0.0
    %57 = vmatpush1.msra.mxu0 %v41
    %58 = vmatprep.subr.mxu0 0.0
    %59 = vmatpush1.msra.mxu0 %v42
    %60 = vmatprep.subr.mxu0 0.0
    %61 = vmatpush1.msra.mxu0 %v43
    %62 = vmatprep.subr.mxu0 0.0
    %63 = vmatpush1.msra.mxu0 %v44
    %64 = vmatprep.subr.mxu0 0.0
    %65 = vmatpush1.msra.mxu0 0.0
    %66 = vmatprep.subr.mxu0 0.0
    %67 = vmatpush1.msra.mxu0 0.0
    %68 = vmatprep.subr.mxu0 0.0
    %69 = vmatpush1.msra.mxu0 0.0
    %70 = vmatprep.subr.mxu0 0.0
    %71 = vmatpush1.msra.mxu0 0.0
    %72 = vmatprep.subr.mxu0 0.0
    %73 = vmatpush1.msra.mxu0 0.0
    %74 = vmatprep.subr.mxu0 0.0
    %75 = vmatpush1.msra.mxu0 0.0
    %76 = vmatprep.subr.mxu0 0.0
    %77 = vmatpush1.msra.mxu0 0.0
    %78 = vmatprep.subr.mxu0 0.0
    %79 = vmatpush1.msra.mxu0 0.0
    %80 = vmatprep.subr.mxu0 0.0
    %81 = vmatpush1.msra.mxu0 0.0
    %82 = vmatprep.subr.mxu0 0.0
    %83 = vmatpush1.msra.mxu0 0.0
    %84 = vmatprep.subr.mxu0 0.0
    %85 = vmatpush1.msra.mxu0 0.0
    %86 = vmatprep.subr.mxu0 0.0
    %87 = vmatpush1.msra.mxu0 0.0
    %88 = vmatprep.subr.mxu0 0.0
    %89 = vmatpush1.msra.mxu0 0.0
    %90 = vmatprep.subr.mxu0 0.0
    %91 = vmatpush1.msra.mxu0 0.0
    %92 = vmatprep.subr.mxu0 0.0
    %93 = vmatpush1.msra.mxu0 0.0
    %94 = vmatprep.subr.mxu0 0.0
    %95 = vmatpush1.msra.mxu0 0.0
    %96 = vmatprep.subr.mxu0 0.0
    %97 = vmatpush1.msra.mxu0 0.0
    %98 = vmatprep.subr.mxu0 0.0
    %99 = vmatpush1.msra.mxu0 0.0
    %100 = vmatprep.subr.mxu0 0.0
    %101 = vmatpush1.msra.mxu0 0.0
    %102 = vmatprep.subr.mxu0 0.0
    %103 = vmatpush1.msra.mxu0 0.0
    %104 = vmatprep.subr.mxu0 0.0
    %105 = vmatpush1.msra.mxu0 0.0
    %106 = vmatprep.subr.mxu0 0.0
    %107 = vmatpush1.msra.mxu0 0.0
    %108 = vmatprep.subr.mxu0 0.0
    %109 = vmatpush1.msra.mxu0 0.0
    %110 = vmatprep.subr.mxu0 0.0
    %111 = vmatpush1.msra.mxu0 0.0
    %112 = vmatprep.subr.mxu0 0.0
    %113 = vmatpush1.msra.mxu0 0.0
    %114 = vmatprep.subr.mxu0 0.0
    %115 = vmatpush1.msra.mxu0 0.0
    %116 = vmatprep.subr.mxu0 0.0
    %117 = vmatpush1.msra.mxu0 0.0
    %118 = vmatprep.subr.mxu0 0.0
    %119 = vmatpush1.msra.mxu0 0.0
    %120 = vmatprep.mubr.f32.mxu0 0.0
    %121 = vmatmul.mubr.f32.gmra.mrb[0].mxu0 %v54
    %v122 = vpop.f32.mrb[0].mxu0
    %v123 = vadd.f32 %v50, %v122
    %v124 = vpop.f32.mrb[0].mxu0
    %125 = vdwg.mxu0
    %vm126 = vcmp.gt.f32.partialorder %v123, 0.0
    %v127 = vsel %vm126, 2.0, 1.01
    %v128 = vmul.f32 %v123, %v127
    %v129 = vld [vmem:[%s3] sm:$0xff]
    %v130 = vld [vmem:[%s3 + $0x8] sm:$0xff]
    %v131 = vld [vmem:[%s3 + $0x10] sm:$0xff]
    %v132 = vld [vmem:[%s3 + $0x18] sm:$0xff]
    %v133 = vld [vmem:[%s3 + $0x20] sm:$0xff]
    %v134 = vld [vmem:[%s3 + $0x28] sm:$0xff]
    %v135 = vld [vmem:[%s3 + $0x30] sm:$0xff]
    %v136 = vld [vmem:[%s3 + $0x38] sm:$0xff]
    %v137 = vld [vmem:[%s3 + $0x40] sm:$0xff]
    %v138 = vld [vmem:[%s3 + $0x48] sm:$0xff]
    %v139 = vld [vmem:[%s3 + $0x50] sm:$0xff]
    %v140 = vld [vmem:[%s3 + $0x58] sm:$0xff]
    %v141 = vld [vmem:[%s3 + $0x60] sm:$0xff]
    %v142 = vld [vmem:[%s3 + $0x68] sm:$0xff]
    %v143 = vld [vmem:[%s3 + $0x70] sm:$0xff]
    %v144 = vld [vmem:[%s3 + $0x78] sm:$0xff]
    %v145 = vld [vmem:[%s4] sm:$0x1]
    %v147 = vlaneseq
    %v148 = vshrl.u32 %v147, 7
    %v149 = vsub.s32 0, %v148
    %v150 = vrot.slane %v145, %v149
    %152 = vmatprep.subr.mxu0 0.0
    %153 = vmatpush1.msra.mxu0 %v129
    %154 = vmatprep.subr.mxu0 0.0
    %155 = vmatpush1.msra.mxu0 %v130
    %156 = vmatprep.subr.mxu0 0.0
    %157 = vmatpush1.msra.mxu0 %v131
    %158 = vmatprep.subr.mxu0 0.0
    %159 = vmatpush1.msra.mxu0 %v132
    %160 = vmatprep.subr.mxu0 0.0
    %161 = vmatpush1.msra.mxu0 %v133
    %162 = vmatprep.subr.mxu0 0.0
    %163 = vmatpush1.msra.mxu0 %v134
    %164 = vmatprep.subr.mxu0 0.0
    %165 = vmatpush1.msra.mxu0 %v135
    %166 = vmatprep.subr.mxu0 0.0
    %167 = vmatpush1.msra.mxu0 %v136
    %168 = vmatprep.subr.mxu0 0.0
    %169 = vmatpush1.msra.mxu0 %v137
    %170 = vmatprep.subr.mxu0 0.0
    %171 = vmatpush1.msra.mxu0 %v138
    %172 = vmatprep.subr.mxu0 0.0
    %173 = vmatpush1.msra.mxu0 %v139
    %174 = vmatprep.subr.mxu0 0.0
    %175 = vmatpush1.msra.mxu0 %v140
    %176 = vmatprep.subr.mxu0 0.0
    %177 = vmatpush1.msra.mxu0 %v141
    %178 = vmatprep.subr.mxu0 0.0
    %179 = vmatpush1.msra.mxu0 %v142
    %180 = vmatprep.subr.mxu0 0.0
    %181 = vmatpush1.msra.mxu0 %v143
    %182 = vmatprep.subr.mxu0 0.0
    %183 = vmatpush1.msra.mxu0 %v144
    %184 = vmatprep.subr.mxu0 0.0
    %185 = vmatpush1.msra.mxu0 0.0
    %186 = vmatprep.subr.mxu0 0.0
    %187 = vmatpush1.msra.mxu0 0.0
    %188 = vmatprep.subr.mxu0 0.0
    %189 = vmatpush1.msra.mxu0 0.0
    %190 = vmatprep.subr.mxu0 0.0
    %191 = vmatpush1.msra.mxu0 0.0
    %192 = vmatprep.subr.mxu0 0.0
    %193 = vmatpush1.msra.mxu0 0.0
    %194 = vmatprep.subr.mxu0 0.0
    %195 = vmatpush1.msra.mxu0 0.0
    %196 = vmatprep.subr.mxu0 0.0
    %197 = vmatpush1.msra.mxu0 0.0
    %198 = vmatprep.subr.mxu0 0.0
    %199 = vmatpush1.msra.mxu0 0.0
    %200 = vmatprep.subr.mxu0 0.0
    %201 = vmatpush1.msra.mxu0 0.0
    %202 = vmatprep.subr.mxu0 0.0
    %203 = vmatpush1.msra.mxu0 0.0
    %204 = vmatprep.subr.mxu0 0.0
    %205 = vmatpush1.msra.mxu0 0.0
    %206 = vmatprep.subr.mxu0 0.0
    %207 = vmatpush1.msra.mxu0 0.0
    %208 = vmatprep.subr.mxu0 0.0
    %209 = vmatpush1.msra.mxu0 0.0
    %210 = vmatprep.subr.mxu0 0.0
    %211 = vmatpush1.msra.mxu0 0.0
    %212 = vmatprep.subr.mxu0 0.0
    %213 = vmatpush1.msra.mxu0 0.0
    %214 = vmatprep.subr.mxu0 0.0
    %215 = vmatpush1.msra.mxu0 0.0
    %216 = vmatprep.mubr.f32.mxu0 0.0
    %217 = vmatmul.mubr.f32.gmra.mrb[0].mxu0 %v128
    %v218 = vpop.f32.mrb[0].mxu0
    %v219 = vadd.f32 %v150, %v218
    %v220 = vpop.f32.mrb[0].mxu0
    %221 = vdwg.mxu0
    %vm222 = vcmp.gt.f32.partialorder %v219, 0.0
    %v223 = vsel %vm222, 2.0, 1.01
    %v224 = vmul.f32 %v219, %v223
    %v225 = vld [vmem:[%s5] sm:$0xff]
    %v226 = vld [vmem:[%s5 + $0x8] sm:$0xff]
    %v227 = vld [vmem:[%s5 + $0x10] sm:$0xff]
    %v228 = vld [vmem:[%s5 + $0x18] sm:$0xff]
    %v229 = vld [vmem:[%s5 + $0x20] sm:$0xff]
    %v230 = vld [vmem:[%s5 + $0x28] sm:$0xff]
    %v231 = vld [vmem:[%s5 + $0x30] sm:$0xff]
    %v232 = vld [vmem:[%s5 + $0x38] sm:$0xff]
    %v233 = vld [vmem:[%s5 + $0x40] sm:$0xff]
    %v234 = vld [vmem:[%s5 + $0x48] sm:$0xff]
    %v235 = vld [vmem:[%s5 + $0x50] sm:$0xff]
    %v236 = vld [vmem:[%s5 + $0x58] sm:$0xff]
    %v237 = vld [vmem:[%s5 + $0x60] sm:$0xff]
    %v238 = vld [vmem:[%s5 + $0x68] sm:$0xff]
    %v239 = vld [vmem:[%s5 + $0x70] sm:$0xff]
    %v240 = vld [vmem:[%s5 + $0x78] sm:$0xff]
    %v241 = vld [vmem:[%s6] sm:$0x1]
    %v243 = vlaneseq
    %v244 = vshrl.u32 %v243, 7
    %v245 = vsub.s32 0, %v244
    %v246 = vrot.slane %v241, %v245
    %248 = vmatprep.subr.mxu0 0.0
    %249 = vmatpush1.msra.mxu0 %v225
    %250 = vmatprep.subr.mxu0 0.0
    %251 = vmatpush1.msra.mxu0 %v226
    %252 = vmatprep.subr.mxu0 0.0
    %253 = vmatpush1.msra.mxu0 %v227
    %254 = vmatprep.subr.mxu0 0.0
    %255 = vmatpush1.msra.mxu0 %v228
    %256 = vmatprep.subr.mxu0 0.0
    %257 = vmatpush1.msra.mxu0 %v229
    %258 = vmatprep.subr.mxu0 0.0
    %259 = vmatpush1.msra.mxu0 %v230
    %260 = vmatprep.subr.mxu0 0.0
    %261 = vmatpush1.msra.mxu0 %v231
    %262 = vmatprep.subr.mxu0 0.0
    %263 = vmatpush1.msra.mxu0 %v232
    %264 = vmatprep.subr.mxu0 0.0
    %265 = vmatpush1.msra.mxu0 %v233
    %266 = vmatprep.subr.mxu0 0.0
    %267 = vmatpush1.msra.mxu0 %v234
    %268 = vmatprep.subr.mxu0 0.0
    %269 = vmatpush1.msra.mxu0 %v235
    %270 = vmatprep.subr.mxu0 0.0
    %271 = vmatpush1.msra.mxu0 %v236
    %272 = vmatprep.subr.mxu0 0.0
    %273 = vmatpush1.msra.mxu0 %v237
    %274 = vmatprep.subr.mxu0 0.0
    %275 = vmatpush1.msra.mxu0 %v238
    %276 = vmatprep.subr.mxu0 0.0
    %277 = vmatpush1.msra.mxu0 %v239
    %278 = vmatprep.subr.mxu0 0.0
    %279 = vmatpush1.msra.mxu0 %v240
    %280 = vmatprep.subr.mxu0 0.0
    %281 = vmatpush1.msra.mxu0 0.0
    %282 = vmatprep.subr.mxu0 0.0
    %283 = vmatpush1.msra.mxu0 0.0
    %284 = vmatprep.subr.mxu0 0.0
    %285 = vmatpush1.msra.mxu0 0.0
    %286 = vmatprep.subr.mxu0 0.0
    %287 = vmatpush1.msra.mxu0 0.0
    %288 = vmatprep.subr.mxu0 0.0
    %289 = vmatpush1.msra.mxu0 0.0
    %290 = vmatprep.subr.mxu0 0.0
    %291 = vmatpush1.msra.mxu0 0.0
    %292 = vmatprep.subr.mxu0 0.0
    %293 = vmatpush1.msra.mxu0 0.0
    %294 = vmatprep.subr.mxu0 0.0
    %295 = vmatpush1.msra.mxu0 0.0
    %296 = vmatprep.subr.mxu0 0.0
    %297 = vmatpush1.msra.mxu0 0.0
    %298 = vmatprep.subr.mxu0 0.0
    %299 = vmatpush1.msra.mxu0 0.0
    %300 = vmatprep.subr.mxu0 0.0
    %301 = vmatpush1.msra.mxu0 0.0
    %302 = vmatprep.subr.mxu0 0.0
    %303 = vmatpush1.msra.mxu0 0.0
    %304 = vmatprep.subr.mxu0 0.0
    %305 = vmatpush1.msra.mxu0 0.0
    %306 = vmatprep.subr.mxu0 0.0
    %307 = vmatpush1.msra.mxu0 0.0
    %308 = vmatprep.subr.mxu0 0.0
    %309 = vmatpush1.msra.mxu0 0.0
    %310 = vmatprep.subr.mxu0 0.0
    %311 = vmatpush1.msra.mxu0 0.0
    %312 = vmatprep.mubr.f32.mxu0 0.0
    %313 = vmatmul.mubr.f32.gmra.mrb[0].mxu0 %v224
    %v314 = vpop.f32.mrb[0].mxu0
    %v315 = vadd.f32 %v246, %v314
    %v316 = vpop.f32.mrb[0].mxu0
    %317 = vdwg.mxu0
    %vm318 = vcmask 56320
    %319 = vst.msk [vmem:[%s7] sm:$0xff] %vm318, %v315
    // Predicated region
    $region34: #{link_predictor_forward.1} parent=1 // pred_check
      _
    $region35: #{link_predictor_forward.1} parent=1 // pred_check_branch
      %321 = sbr.rel (0) target = $region37
    $region36: #{link_predictor_forward.1} parent=1 // pred_region
      _
    $region37: #{link_predictor_forward.1} parent=1 // pred_fallthru
      _
    // Predicated region
    $region38: #{link_predictor_forward.1} parent=1 // pred_check
      _
    $region39: #{link_predictor_forward.1} parent=1 // pred_check_branch
      %323 = sbr.rel (0) target = $region41
    $region40: #{link_predictor_forward.1} parent=1 // pred_region
      _
    $region41: #{link_predictor_forward.1} parent=1 // pred_fallthru
      _
    %324 = vsyncpa [#allocation3], 1

</llo_original>
